<compile_context>
chip_gen: v7x
topology: tpu7x:2x2x1
jax: 0.10.0
libtpu: 0.0.40
codegen_flags: <defaults>
</compile_context>

<pallas_src>
from functools import partial

import jax
import jax.numpy as jnp
from jax.experimental import pallas as pl
from jax.experimental.pallas import tpu as pltpu

EPS = 1e-5                      # nn.BatchNorm2d default eps
LANE = 128                      # TPU lane width
VMEM_LIMIT_BYTES = 32 * 1024 * 1024


# --------------------------------------------------------------------------
# Kernels
# --------------------------------------------------------------------------
def _stats_kernel(total_rows, patches_ref, w_ref, bias_ref, gamma_ref, beta_ref,
                  scale_ref, shift_ref, sum_sc, sumsq_sc):
    """Pass 1: per-tile conv matmul + accumulate BN statistics; emit scale/shift."""
    i = pl.program_id(0)

    @pl.when(i == 0)
    def _init():
        sum_sc[...] = jnp.zeros_like(sum_sc)
        sumsq_sc[...] = jnp.zeros_like(sumsq_sc)

    # Conv tile on the MXU (bf16/f32 operands, f32 accumulate) + coord bias.
    y = jnp.dot(patches_ref[...], w_ref[...], preferred_element_type=jnp.float32)
    y = y + bias_ref[...]

    sum_sc[...] += jnp.sum(y, axis=0, keepdims=True)
    sumsq_sc[...] += jnp.sum(y * y, axis=0, keepdims=True)

    @pl.when(i == pl.num_programs(0) - 1)
    def _finalize():
        inv_m = jnp.float32(1.0 / total_rows)
        mean = sum_sc[...] * inv_m
        var = jnp.maximum(sumsq_sc[...] * inv_m - mean * mean, 0.0)
        scale = gamma_ref[...] * jax.lax.rsqrt(var + EPS)        # EUP rsqrt
        scale_ref[...] = scale
        shift_ref[...] = beta_ref[...] - mean * scale


def _norm_kernel(patches_ref, w_ref, bias_ref, scale_ref, shift_ref, o_ref):
    """Pass 2: recompute conv tile, apply fused BN (one FMA) + ReLU."""
    y = jnp.dot(patches_ref[...], w_ref[...], preferred_element_type=jnp.float32)
    y = y + bias_ref[...]
    o_ref[...] = jnp.maximum(y * scale_ref[...] + shift_ref[...], 0.0)


# --------------------------------------------------------------------------
# Plain-JAX glue
# --------------------------------------------------------------------------
def _coord_maps(H, W):
    """AddCoords coordinate planes, channel-last (H, W, 2) with (xx, yy)."""
    xx = jnp.broadcast_to(jnp.arange(W, dtype=jnp.float32)[None, :], (H, W))
    yy = jnp.broadcast_to(jnp.arange(H, dtype=jnp.float32)[:, None], (H, W))
    # max(.,1) guards the degenerate H==1 / W==1 case (avoids inf/nan).
    xx = xx / max(W - 1, 1) * 2.0 - 1.0
    yy = yy / max(H - 1, 1) * 2.0 - 1.0
    return jnp.stack([xx, yy], axis=-1)


def _im2col_nhwc(x_nhwc, ksize, stride, pad):
    """im2col, kernel-position major / channel minor. Returns (M, k*k*C)."""
    N, H, W, C = x_nhwc.shape
    Ho = (H + 2 * pad - ksize) // stride + 1
    Wo = (W + 2 * pad - ksize) // stride + 1
    xp = jnp.pad(x_nhwc, ((0, 0), (pad, pad), (pad, pad), (0, 0)))
    cols = []
    for kh in range(ksize):
        for kw in range(ksize):
            cols.append(xp[:, kh:kh + stride * Ho:stride,
                           kw:kw + stride * Wo:stride, :])
    patches = jnp.stack(cols, axis=3)                       # (N, Ho, Wo, k*k, C)
    return patches.reshape(N * Ho * Wo, ksize * ksize * C), Ho, Wo


def _choose_tile_rows(M, hw, n_images, target):
    """Tile rows: divisor of Ho*Wo, or multiple of Ho*Wo dividing M, so the
    coord-bias block index is a simple modulo; sublane-friendly (mult of 8)."""
    cands = set()
    for d in range(1, hw + 1):
        if hw % d == 0:
            cands.add(d)
    for r in range(1, n_images + 1):
        if n_images % r == 0:
            cands.add(r * hw)
    best = M                                                # fallback: one block
    for c in sorted(cands):
        if c <= target and (c % 8 == 0 or c == M):
            best = c
    return best


# --------------------------------------------------------------------------
# Forward
# --------------------------------------------------------------------------
def down_forward(x_nchw, w_oihw, gamma, beta, *,
                 matmul_dtype=jnp.bfloat16, target_tile_rows=512):
    """Down.forward: CoordConv(4,2,1,bias=False) -> BatchNorm2d(train) -> ReLU."""
    N, Cin, H, W = x_nchw.shape
    out_c, w_cin, KH, KW = w_oihw.shape
    assert w_cin == Cin + 2, "CoordConv conv weight must have in_c + 2 channels"
    stride, pad = 2, 1

    # im2col of the image channels only (coords folded into a bias below).
    x_nhwc = jnp.transpose(x_nchw, (0, 2, 3, 1)).astype(jnp.float32)
    patches, Ho, Wo = _im2col_nhwc(x_nhwc, KH, stride, pad)          # (M, K)
    M, K = patches.shape
    hw = Ho * Wo
    c_pad = ((out_c + LANE - 1) // LANE) * LANE

    # Image-channel weight (K, out_c), zero-padded to lane-dense (K, c_pad).
    w_x = jnp.transpose(w_oihw[:, :Cin], (2, 3, 1, 0)).reshape(K, out_c)
    w_mat = jnp.zeros((K, c_pad), jnp.float32).at[:, :out_c].set(w_x)

    # Coordinate channels are input independent -> precompute their conv as a
    # per-spatial-position additive bias (hw, c_pad), shared across the batch.
    coord_patches, _, _ = _im2col_nhwc(_coord_maps(H, W)[None], KH, stride, pad)
    w_c = jnp.transpose(w_oihw[:, Cin:], (2, 3, 1, 0)).reshape(KH * KW * 2, out_c)
    coord_bias = jnp.dot(coord_patches, w_c,
                         precision=jax.lax.Precision.HIGHEST)
    coord_bias = jnp.zeros((hw, c_pad), jnp.float32).at[:, :out_c].set(coord_bias)

    gamma_p = jnp.zeros((1, c_pad), jnp.float32).at[0, :out_c].set(gamma)
    beta_p = jnp.zeros((1, c_pad), jnp.float32).at[0, :out_c].set(beta)

    # -------- tiling over M = N*Ho*Wo rows ----------------------------------
    tm = _choose_tile_rows(M, hw, N, target_tile_rows)
    assert M % tm == 0
    num_tiles = M // tm
    reps = max(1, tm // hw)
    bias_arr = jnp.tile(coord_bias, (reps, 1)) if reps > 1 else coord_bias
    n_bias_blocks = bias_arr.shape[0] // tm

    patches_mm = patches.astype(matmul_dtype)
    w_mm = w_mat.astype(matmul_dtype)

    patches_spec = pl.BlockSpec((tm, K), lambda i: (i, 0))
    w_spec = pl.BlockSpec((K, c_pad), lambda i: (0, 0))
    if n_bias_blocks > 1:
        bias_spec = pl.BlockSpec((tm, c_pad), lambda i: (i % n_bias_blocks, 0))
    else:
        bias_spec = pl.BlockSpec((tm, c_pad), lambda i: (0, 0))
    row_spec = pl.BlockSpec((1, c_pad), lambda i: (0, 0))

    itemsize = jnp.finfo(matmul_dtype).bits // 8
    mm_bytes = M * K * itemsize + K * c_pad * itemsize
    bias_bytes = bias_arr.shape[0] * c_pad * 4

    # ---- pass 1: batch statistics -> fused BN scale/shift -------------------
    cost1 = pl.CostEstimate(flops=2 * M * K * c_pad + 4 * M * c_pad,
                            transcendentals=c_pad,
                            bytes_accessed=mm_bytes + bias_bytes + 4 * c_pad * 4)
    scale, shift = pl.pallas_call(
        partial(_stats_kernel, M),
        out_shape=(jax.ShapeDtypeStruct((1, c_pad), jnp.float32),
                   jax.ShapeDtypeStruct((1, c_pad), jnp.float32)),
        grid_spec=pltpu.PrefetchScalarGridSpec(
            num_scalar_prefetch=0,
            grid=(num_tiles,),
            in_specs=[patches_spec, w_spec, bias_spec, row_spec, row_spec],
            out_specs=[row_spec, row_spec],
            scratch_shapes=[pltpu.VMEM((1, c_pad), jnp.float32),
                            pltpu.VMEM((1, c_pad), jnp.float32)]),
        compiler_params=pltpu.CompilerParams(
            dimension_semantics=("arbitrary",),
            vmem_limit_bytes=VMEM_LIMIT_BYTES),
        cost_estimate=cost1,
    )(patches_mm, w_mm, bias_arr, gamma_p, beta_p)

    # ---- pass 2: normalize + ReLU (lane-dense output) ------------------------
    cost2 = pl.CostEstimate(flops=2 * M * K * c_pad + 3 * M * c_pad,
                            transcendentals=0,
                            bytes_accessed=mm_bytes + bias_bytes
                            + 2 * c_pad * 4 + M * c_pad * 4)
    out_flat = pl.pallas_call(
        _norm_kernel,
        out_shape=jax.ShapeDtypeStruct((M, c_pad), jnp.float32),
        grid_spec=pltpu.PrefetchScalarGridSpec(
            num_scalar_prefetch=0,
            grid=(num_tiles,),
            in_specs=[patches_spec, w_spec, bias_spec, row_spec, row_spec],
            out_specs=pl.BlockSpec((tm, c_pad), lambda i: (i, 0))),
        compiler_params=pltpu.CompilerParams(
            dimension_semantics=("parallel",),
            vmem_limit_bytes=VMEM_LIMIT_BYTES),
        cost_estimate=cost2,
    )(patches_mm, w_mm, bias_arr, scale, shift)

    out = out_flat[:, :out_c].reshape(N, Ho, Wo, out_c)
    return jnp.transpose(out, (0, 3, 1, 2))                  # back to NCHW


# --------------------------------------------------------------------------
# Pure-JAX reference (f32) for correctness
# --------------------------------------------------------------------------
def down_reference(x_nchw, w_oihw, gamma, beta):
    N, Cin, H, W = x_nchw.shape
    coords = jnp.transpose(_coord_maps(H, W), (2, 0, 1))[None]       # (1,2,H,W)
    coords = jnp.broadcast_to(coords, (N, 2, H, W))
    x_aug = jnp.concatenate([x_nchw, coords], axis=1)
    conv = jax.lax.conv_general_dilated(
        x_aug, w_oihw, window_strides=(2, 2), padding=((1, 1), (1, 1)),
        dimension_numbers=("NCHW", "OIHW", "NCHW"),
        precision=jax.lax.Precision.HIGHEST)
    mean = conv.mean(axis=(0, 2, 3), keepdims=True)
    var = conv.var(axis=(0, 2, 3), keepdims=True)
    y = (conv - mean) / jnp.sqrt(var + EPS)
    y = y * gamma.reshape(1, -1, 1, 1) + beta.reshape(1, -1, 1, 1)
    return jnp.maximum(y, 0.0)


if __name__ == "__main__":
    # Down(in_c=4, out_c=8) on a 2x4x16x16 input.
    in_c, out_c = 4, 8
    N, H, W = 2, 16, 16

    key = jax.random.PRNGKey(0)
    kx, kw = jax.random.split(key)
    x = jax.random.normal(kx, (N, in_c, H, W), dtype=jnp.float32)
    w = 0.1 * jax.random.normal(kw, (out_c, in_c + 2, 4, 4), dtype=jnp.float32)
    gamma = jnp.ones((out_c,), dtype=jnp.float32)   # BatchNorm2d default init
    beta = jnp.zeros((out_c,), dtype=jnp.float32)

    ref = jax.block_until_ready(down_reference(x, w, gamma, beta))

    # f32 matmul path: tight check of the full structure (tiling, coord fold,
    # two-pass BN, channel padding).  target_tile_rows=32 forces a 4-step grid
    # so the cross-tile statistics accumulation is actually exercised.
    out_f32 = jax.block_until_ready(
        down_forward(x, w, gamma, beta, matmul_dtype=jnp.float32,
                     target_tile_rows=32))
    assert out_f32.shape == (N, out_c, H // 2, W // 2), out_f32.shape
    assert jnp.allclose(out_f32, ref, atol=1e-3, rtol=1e-3), \
        float(jnp.max(jnp.abs(out_f32 - ref)))

    # bf16 matmul path (recommended on v5e/v6e/v7x): only operand rounding
    # differs (statistics / BN / ReLU stay f32), hence the looser tolerance.
    out_bf16 = jax.block_until_ready(
        down_forward(x, w, gamma, beta, matmul_dtype=jnp.bfloat16,
                     target_tile_rows=32))
    assert out_bf16.shape == (N, out_c, H // 2, W // 2), out_bf16.shape
    assert jnp.allclose(out_bf16, ref, atol=5e-2, rtol=5e-2), \
        float(jnp.max(jnp.abs(out_bf16 - ref)))

    print("KERNEL_OK")
</pallas_src>

<mosaic_0001>
module attributes {stable_mosaic.version = 11 : i64} {
  func.func @_stats_kernel(%arg0: i32, %arg1: memref<32x64xf32, #tpu.memory_space<vmem>>, %arg2: memref<64x128xf32, #tpu.memory_space<vmem>>, %arg3: memref<32x128xf32, #tpu.memory_space<vmem>>, %arg4: memref<1x128xf32, #tpu.memory_space<vmem>>, %arg5: memref<1x128xf32, #tpu.memory_space<vmem>>, %arg6: memref<1x128xf32, #tpu.memory_space<vmem>>, %arg7: memref<1x128xf32, #tpu.memory_space<vmem>>, %arg8: memref<1x128xf32, #tpu.memory_space<vmem>>, %arg9: memref<1x128xf32, #tpu.memory_space<vmem>>) attributes {dimension_semantics = [#tpu.dimension_semantics<arbitrary>], iteration_bounds = array<i64: 4>, scalar_prefetch = 0 : i64, scratch_operands = 2 : i64, tpu.core_type = #tpu.core_type<tc>, window_params = [{transform_indices = @transform_0, window_bounds = array<i64: 32, 64>}, {pipeline_mode = #tpu.pipeline_mode<synchronous>, transform_indices = @transform_1, window_bounds = array<i64: 64, 128>}, {transform_indices = @transform_2, window_bounds = array<i64: 32, 128>}, {pipeline_mode = #tpu.pipeline_mode<synchronous>, transform_indices = @transform_3, window_bounds = array<i64: 1, 128>}, {pipeline_mode = #tpu.pipeline_mode<synchronous>, transform_indices = @transform_4, window_bounds = array<i64: 1, 128>}, {pipeline_mode = #tpu.pipeline_mode<synchronous>, transform_indices = @transform_5, window_bounds = array<i64: 1, 128>}, {pipeline_mode = #tpu.pipeline_mode<synchronous>, transform_indices = @transform_6, window_bounds = array<i64: 1, 128>}]} {
    %c0_i32 = arith.constant 0 : i32
    %0 = arith.cmpi eq, %arg0, %c0_i32 : i32
    %1 = arith.extui %0 : i1 to i32
    %c0_i32_0 = arith.constant 0 : i32
    %2 = arith.cmpi ne, %1, %c0_i32_0 : i32
    scf.if %2 {
      %cst_17 = arith.constant 0.000000e+00 : f32
      %22 = vector.broadcast %cst_17 : f32 to vector<1x128xf32>
      %c0_18 = arith.constant 0 : index
      %c0_19 = arith.constant 0 : index
      %23 = vector.load %arg8[%c0_18, %c0_19] : memref<1x128xf32, #tpu.memory_space<vmem>>, vector<1x128xf32>
      tpu.vector_store %arg8[%c0_18, %c0_19], %22 {strides = array<i32>} : memref<1x128xf32, #tpu.memory_space<vmem>>, vector<1x128xf32>,
      %cst_20 = arith.constant 0.000000e+00 : f32
      %24 = vector.broadcast %cst_20 : f32 to vector<1x128xf32>
      %c0_21 = arith.constant 0 : index
      %c0_22 = arith.constant 0 : index
      %25 = vector.load %arg9[%c0_21, %c0_22] : memref<1x128xf32, #tpu.memory_space<vmem>>, vector<1x128xf32>
      tpu.vector_store %arg9[%c0_21, %c0_22], %24 {strides = array<i32>} : memref<1x128xf32, #tpu.memory_space<vmem>>, vector<1x128xf32>,
    } else {
    }
    %c0 = arith.constant 0 : index
    %c0_1 = arith.constant 0 : index
    %3 = vector.load %arg1[%c0, %c0_1] : memref<32x64xf32, #tpu.memory_space<vmem>>, vector<32x64xf32>
    %c0_2 = arith.constant 0 : index
    %c0_3 = arith.constant 0 : index
    %4 = vector.load %arg2[%c0_2, %c0_3] : memref<64x128xf32, #tpu.memory_space<vmem>>, vector<64x128xf32>
    %cst = arith.constant dense<0.000000e+00> : vector<32x128xf32>
    %5 = tpu.matmul %3, %4, %cst {dimension_numbers = #tpu.dot_dimension_numbers<[1], [0], [0], [1], [0, 0, 1, 1], [], []>} : vector<32x64xf32>, vector<64x128xf32>, vector<32x128xf32> -> vector<32x128xf32>
    %c0_4 = arith.constant 0 : index
    %c0_5 = arith.constant 0 : index
    %6 = vector.load %arg3[%c0_4, %c0_5] : memref<32x128xf32, #tpu.memory_space<vmem>>, vector<32x128xf32>
    %7 = arith.addf %5, %6 : vector<32x128xf32>
    %c0_6 = arith.constant 0 : index
    %c0_7 = arith.constant 0 : index
    %8 = vector.load %arg8[%c0_6, %c0_7] : memref<1x128xf32, #tpu.memory_space<vmem>>, vector<1x128xf32>
    %cst_8 = arith.constant dense<0.000000e+00> : vector<128xf32>
    %9 = vector.multi_reduction <add>, %7, %cst_8 [0] : vector<32x128xf32> to vector<128xf32>
    %10 = vector.shape_cast %9 : vector<128xf32> to vector<1x128xf32>
    %11 = arith.addf %8, %10 : vector<1x128xf32>
    %c0_9 = arith.constant 0 : index
    %c0_10 = arith.constant 0 : index
    %12 = vector.load %arg8[%c0_9, %c0_10] : memref<1x128xf32, #tpu.memory_space<vmem>>, vector<1x128xf32>
    tpu.vector_store %arg8[%c0_9, %c0_10], %11 {strides = array<i32>} : memref<1x128xf32, #tpu.memory_space<vmem>>, vector<1x128xf32>,
    %c0_11 = arith.constant 0 : index
    %c0_12 = arith.constant 0 : index
    %13 = vector.load %arg9[%c0_11, %c0_12] : memref<1x128xf32, #tpu.memory_space<vmem>>, vector<1x128xf32>
    %14 = arith.mulf %7, %7 : vector<32x128xf32>
    %cst_13 = arith.constant dense<0.000000e+00> : vector<128xf32>
    %15 = vector.multi_reduction <add>, %14, %cst_13 [0] : vector<32x128xf32> to vector<128xf32>
    %16 = vector.shape_cast %15 : vector<128xf32> to vector<1x128xf32>
    %17 = arith.addf %13, %16 : vector<1x128xf32>
    %c0_14 = arith.constant 0 : index
    %c0_15 = arith.constant 0 : index
    %18 = vector.load %arg9[%c0_14, %c0_15] : memref<1x128xf32, #tpu.memory_space<vmem>>, vector<1x128xf32>
    tpu.vector_store %arg9[%c0_14, %c0_15], %17 {strides = array<i32>} : memref<1x128xf32, #tpu.memory_space<vmem>>, vector<1x128xf32>,
    %c3_i32 = arith.constant 3 : i32
    %19 = arith.cmpi eq, %arg0, %c3_i32 : i32
    %20 = arith.extui %19 : i1 to i32
    %c0_i32_16 = arith.constant 0 : i32
    %21 = arith.cmpi ne, %20, %c0_i32_16 : i32
    scf.if %21 {
      %c0_17 = arith.constant 0 : index
      %c0_18 = arith.constant 0 : index
      %22 = vector.load %arg8[%c0_17, %c0_18] : memref<1x128xf32, #tpu.memory_space<vmem>>, vector<1x128xf32>
      %cst_19 = arith.constant 7.812500e-03 : f32
      %23 = vector.broadcast %cst_19 : f32 to vector<1x128xf32>
      %24 = arith.mulf %22, %23 : vector<1x128xf32>
      %c0_20 = arith.constant 0 : index
      %c0_21 = arith.constant 0 : index
      %25 = vector.load %arg9[%c0_20, %c0_21] : memref<1x128xf32, #tpu.memory_space<vmem>>, vector<1x128xf32>
      %cst_22 = arith.constant 7.812500e-03 : f32
      %26 = vector.broadcast %cst_22 : f32 to vector<1x128xf32>
      %27 = arith.mulf %25, %26 : vector<1x128xf32>
      %28 = arith.mulf %24, %24 : vector<1x128xf32>
      %29 = arith.subf %27, %28 : vector<1x128xf32>
      %cst_23 = arith.constant 0.000000e+00 : f32
      %30 = vector.broadcast %cst_23 : f32 to vector<1x128xf32>
      %31 = arith.maximumf %29, %30 : vector<1x128xf32>
      %c0_24 = arith.constant 0 : index
      %c0_25 = arith.constant 0 : index
      %32 = vector.load %arg4[%c0_24, %c0_25] : memref<1x128xf32, #tpu.memory_space<vmem>>, vector<1x128xf32>
      %cst_26 = arith.constant 9.99999974E-6 : f32
      %33 = vector.broadcast %cst_26 : f32 to vector<1x128xf32>
      %34 = arith.addf %31, %33 : vector<1x128xf32>
      %35 = math.rsqrt %34 : vector<1x128xf32>
      %36 = arith.mulf %32, %35 : vector<1x128xf32>
      %c0_27 = arith.constant 0 : index
      %c0_28 = arith.constant 0 : index
      %37 = vector.load %arg6[%c0_27, %c0_28] : memref<1x128xf32, #tpu.memory_space<vmem>>, vector<1x128xf32>
      tpu.vector_store %arg6[%c0_27, %c0_28], %36 {strides = array<i32>} : memref<1x128xf32, #tpu.memory_space<vmem>>, vector<1x128xf32>,
      %c0_29 = arith.constant 0 : index
      %c0_30 = arith.constant 0 : index
      %38 = vector.load %arg5[%c0_29, %c0_30] : memref<1x128xf32, #tpu.memory_space<vmem>>, vector<1x128xf32>
      %39 = arith.mulf %24, %36 : vector<1x128xf32>
      %40 = arith.subf %38, %39 : vector<1x128xf32>
      %c0_31 = arith.constant 0 : index
      %c0_32 = arith.constant 0 : index
      %41 = vector.load %arg7[%c0_31, %c0_32] : memref<1x128xf32, #tpu.memory_space<vmem>>, vector<1x128xf32>
      tpu.vector_store %arg7[%c0_31, %c0_32], %40 {strides = array<i32>} : memref<1x128xf32, #tpu.memory_space<vmem>>, vector<1x128xf32>,
    } else {
    }
    return
  }
  func.func @transform_0(%arg0: i32) -> (i32, i32) {
    %c0_i32 = arith.constant 0 : i32
    %c0_i32_0 = arith.constant 0 : i32
    return %arg0, %c0_i32 : i32, i32
  }
  func.func @transform_1(%arg0: i32) -> (i32, i32) {
    %c0_i32 = arith.constant 0 : i32
    %c0_i32_0 = arith.constant 0 : i32
    %c0_i32_1 = arith.constant 0 : i32
    return %c0_i32, %c0_i32_0 : i32, i32
  }
  func.func @transform_2(%arg0: i32) -> (i32, i32) {
    %c2_i32 = arith.constant 2 : i32
    %c0_i32 = arith.constant 0 : i32
    %0 = arith.cmpi eq, %c2_i32, %c0_i32 : i32
    %c1_i32 = arith.constant 1 : i32
    %1 = arith.select %0, %c1_i32, %c2_i32 : i32
    %2 = arith.remsi %arg0, %1 : i32
    %c0_i32_0 = arith.constant 0 : i32
    %3 = arith.cmpi ne, %2, %c0_i32_0 : i32
    %c0_i32_1 = arith.constant 0 : i32
    %4 = arith.cmpi slt, %2, %c0_i32_1 : i32
    %c0_i32_2 = arith.constant 0 : i32
    %5 = arith.cmpi slt, %1, %c0_i32_2 : i32
    %6 = arith.xori %4, %5 : i1
    %7 = arith.andi %6, %3 : i1
    %8 = arith.addi %2, %1 : i32
    %9 = arith.select %7, %8, %2 : i32
    %c0_i32_3 = arith.constant 0 : i32
    %c0_i32_4 = arith.constant 0 : i32
    return %9, %c0_i32_3 : i32, i32
  }
  func.func @transform_3(%arg0: i32) -> (i32, i32) {
    %c0_i32 = arith.constant 0 : i32
    %c0_i32_0 = arith.constant 0 : i32
    %c0_i32_1 = arith.constant 0 : i32
    return %c0_i32, %c0_i32_0 : i32, i32
  }
  func.func @transform_4(%arg0: i32) -> (i32, i32) {
    %c0_i32 = arith.constant 0 : i32
    %c0_i32_0 = arith.constant 0 : i32
    %c0_i32_1 = arith.constant 0 : i32
    return %c0_i32, %c0_i32_0 : i32, i32
  }
  func.func @transform_5(%arg0: i32) -> (i32, i32) {
    %c0_i32 = arith.constant 0 : i32
    %c0_i32_0 = arith.constant 0 : i32
    %c0_i32_1 = arith.constant 0 : i32
    return %c0_i32, %c0_i32_0 : i32, i32
  }
  func.func @transform_6(%arg0: i32) -> (i32, i32) {
    %c0_i32 = arith.constant 0 : i32
    %c0_i32_0 = arith.constant 0 : i32
    %c0_i32_1 = arith.constant 0 : i32
    return %c0_i32, %c0_i32_0 : i32, i32
  }
}

</mosaic_0001>

<llo_original>
// kernel: tpu_custom_call.1
$region0: #{tpu_custom_call.1}
  #allocation0 [shape = 'u32[]', space=smem, size = 0x4, offset = 0x4, fixed_abs, tag = 'smem constant byte address 0x4 - core index']
  #allocation1 [shape = 'u32[144,128]{1,0:T(1,128)}', space=vmem, size = 0x12000, scoped, tag = 'internal scratch']
  #allocation2 [shape = 'f32[1,128]{1,0:T(1,128)}', space=vmem, size = 0x200, scoped, tag = 'scratch operand']
  #allocation3 [shape = 'f32[1,128]{1,0:T(1,128)}', space=vmem, size = 0x200, scoped, tag = 'scratch operand']
  %s0 = inlined_call_operand.vmem [shape: f32[128,64], index: 0, kind: input, shape index: {}]
  %s1 = inlined_call_operand.vmem [shape: f32[64,128], index: 1, kind: input, shape index: {}]
  %s2 = inlined_call_operand.vmem [shape: f32[64,128], index: 2, kind: input, shape index: {}]
  %s3 = inlined_call_operand.vmem [shape: f32[1,128], index: 3, kind: input, shape index: {}]
  %s4 = inlined_call_operand.vmem [shape: f32[1,128], index: 4, kind: input, shape index: {}]
  %s5 = inlined_call_operand.hbm [shape: f32[1,128], index: 5, kind: output, shape index: {0}]
  %s6 = inlined_call_operand.hbm [shape: f32[1,128], index: 6, kind: output, shape index: {1}]
  %7 = xla_tuple %s5, %s6
  %s8 = sld [smem:[#allocation0]]
  $region69: #{tpu_custom_call.1} parent=0
    _
  %s10 = ssub.s32 1, %s8
  %s11 = scalar_select 0, %s10, %s8
  $region1: #{tpu_custom_call.1} parent=0
    #allocation4 [shape = 'u8[512]{0}', space=vmem, size = 0x400, scoped, tag = 'output window, operand 0, single buffered']
    #allocation5 [shape = 's32[2]{0}', space=sflag, size = 0x8, scoped, tag = 'scoped memory for tpu_custom_call.1']
    #allocation6 [shape = 'u8[512]{0}', space=vmem, size = 0x400, scoped, tag = 'output window, operand 1, single buffered']
    #allocation7 [shape = 's32[1]{0}', space=sflag, size = 0x4, scoped, tag = 'scoped memory for tpu_custom_call.1']
    %12 = vsyncpa [#allocation5], 0
    %13 = vsyncpa [#allocation7], 0
    loop: start=0, step=1, limit=6
    $region2: #{tpu_custom_call.1} parent=1 // loop_pre_header
      _
    $region3: #{tpu_custom_call.1} parent=1 // loop_header
      %s15 = sphi 0, %s19
      %p16 = scmp.ge.s32.totalorder %s15, 6
      %s25 = sphi 0, %s27
      %s28 = sphi 0, %s25
      %s29 = sphi 0, %s28
      %s45 = sphi 0, %s29
      %s49 = sphi 0, %s49
      %s51 = sphi 0, %s49
      %s52 = sphi 0, %s51
      %s66 = sphi 0, %s52
      %s96 = sphi 0, %s98
      %s99 = sphi 0, %s96
      %s100 = sphi 0, %s99
      %s116 = sphi 0, %s100
      %s120 = sphi 0, %s120
      %s122 = sphi 0, %s120
      %s123 = sphi 0, %s122
      %s137 = sphi 0, %s123
      %s141 = sphi 0, %s141
      %s143 = sphi 0, %s141
      %s144 = sphi 0, %s143
      %s158 = sphi 0, %s144
      %s162 = sphi 0, %s162
      %s164 = sphi 0, %s162
      %s165 = sphi 0, %s164
      %s179 = sphi 0, %s165
      %s183 = sphi 0, %s183
      %s185 = sphi 0, %s183
      %s186 = sphi 0, %s185
      %s200 = sphi 0, %s186
    $region4: #{tpu_custom_call.1} parent=1 // loop_header_branch
      %18 = sbr.rel (%p16) target = $region8
    $region5: #{tpu_custom_call.1} parent=1 // loop_body
      %s20 = ssub.s32 %s15, 1
      %s21 = ssub.s32 %s15, 2
      %s22 = sadd.s32 %s15, 1
      %s23 = ssub.s32 %s15, %s22
      %p24 = scmp.eq.s32.totalorder %s23, 0
      %s26 = sadd.s32 %s25, 1
      %s27 = scalar_select %p24, %s25, %s26
      %p30 = pneg %p24
      %p31 = scmp.eq.s32.totalorder %s15, 3
      %p32 = por %p30, %p31
      %p33 = scmp.ne.s32.totalorder %s25, %s28
      %p34 = scmp.eq.s32.totalorder %s15, 0
      %p35 = por %p33, %p34
      %p36 = scmp.ne.s32.totalorder %s25, %s28
      %p37 = scmp.eq.s32.totalorder %s20, 3
      %p38 = por %p36, %p37
      %p39 = scmp.ne.s32.totalorder %s28, %s29
      %p40 = scmp.eq.s32.totalorder %s20, 0
      %p41 = por %p39, %p40
      %p42 = scmp.ne.s32.totalorder %s28, %s29
      %p43 = scmp.eq.s32.totalorder %s21, 3
      %p44 = por %p42, %p43
      %p46 = scmp.ne.s32.totalorder %s29, %s45
      %p47 = scmp.eq.s32.totalorder %s21, 0
      %p48 = por %p46, %p47
      %s50 = sadd.s32 %s49, 1
      %p53 = scmp.eq.s32.totalorder %s15, 3
      %p54 = scmp.ne.s32.totalorder %s49, %s51
      %p55 = scmp.eq.s32.totalorder %s15, 0
      %p56 = por %p54, %p55
      %p57 = scmp.ne.s32.totalorder %s49, %s51
      %p58 = scmp.eq.s32.totalorder %s20, 3
      %p59 = por %p57, %p58
      %p60 = scmp.ne.s32.totalorder %s51, %s52
      %p61 = scmp.eq.s32.totalorder %s20, 0
      %p62 = por %p60, %p61
      %p63 = scmp.ne.s32.totalorder %s51, %s52
      %p64 = scmp.eq.s32.totalorder %s21, 3
      %p65 = por %p63, %p64
      %p67 = scmp.ne.s32.totalorder %s52, %s66
      %p68 = scmp.eq.s32.totalorder %s21, 0
      %p69 = por %p67, %p68
      %p70 = scmp.lt.s32.totalorder %s15, 0
      %s71 = ssub.s32 0, %s15
      %s72 = scalar_select %p70, %s71, %s15
      %s73 = sand.u32 %s72, 1
      %s74 = ssub.s32 0, %s73
      %s75 = scalar_select %p70, %s74, %s73
      %p76 = scmp.ne.s32.totalorder %s75, 0
      %p77 = scmp.lt.s32.totalorder %s75, 0
      %p78 = pnand %p77, %p76
      %p79 = pneg %p78
      %s80 = sadd.s32 %s75, 2
      %s81 = scalar_select %p79, %s80, %s75
      %p82 = scmp.lt.s32.totalorder %s22, 0
      %s83 = ssub.s32 0, %s22
      %s84 = scalar_select %p82, %s83, %s22
      %s85 = sand.u32 %s84, 1
      %s86 = ssub.s32 0, %s85
      %s87 = scalar_select %p82, %s86, %s85
      %p88 = scmp.ne.s32.totalorder %s87, 0
      %p89 = scmp.lt.s32.totalorder %s87, 0
      %p90 = pnand %p89, %p88
      %p91 = pneg %p90
      %s92 = sadd.s32 %s87, 2
      %s93 = scalar_select %p91, %s92, %s87
      %s94 = ssub.s32 %s81, %s93
      %p95 = scmp.eq.s32.totalorder %s94, 0
      %s97 = sadd.s32 %s96, 1
      %s98 = scalar_select %p95, %s96, %s97
      %p101 = pneg %p95
      %p102 = scmp.eq.s32.totalorder %s15, 3
      %p103 = por %p101, %p102
      %p104 = scmp.ne.s32.totalorder %s96, %s99
      %p105 = scmp.eq.s32.totalorder %s15, 0
      %p106 = por %p104, %p105
      %p107 = scmp.ne.s32.totalorder %s96, %s99
      %p108 = scmp.eq.s32.totalorder %s20, 3
      %p109 = por %p107, %p108
      %p110 = scmp.ne.s32.totalorder %s99, %s100
      %p111 = scmp.eq.s32.totalorder %s20, 0
      %p112 = por %p110, %p111
      %p113 = scmp.ne.s32.totalorder %s99, %s100
      %p114 = scmp.eq.s32.totalorder %s21, 3
      %p115 = por %p113, %p114
      %p117 = scmp.ne.s32.totalorder %s100, %s116
      %p118 = scmp.eq.s32.totalorder %s21, 0
      %p119 = por %p117, %p118
      %s121 = sadd.s32 %s120, 1
      %p124 = scmp.eq.s32.totalorder %s15, 3
      %p125 = scmp.ne.s32.totalorder %s120, %s122
      %p126 = scmp.eq.s32.totalorder %s15, 0
      %p127 = por %p125, %p126
      %p128 = scmp.ne.s32.totalorder %s120, %s122
      %p129 = scmp.eq.s32.totalorder %s20, 3
      %p130 = por %p128, %p129
      %p131 = scmp.ne.s32.totalorder %s122, %s123
      %p132 = scmp.eq.s32.totalorder %s20, 0
      %p133 = por %p131, %p132
      %p134 = scmp.ne.s32.totalorder %s122, %s123
      %p135 = scmp.eq.s32.totalorder %s21, 3
      %p136 = por %p134, %p135
      %p138 = scmp.ne.s32.totalorder %s123, %s137
      %p139 = scmp.eq.s32.totalorder %s21, 0
      %p140 = por %p138, %p139
      %s142 = sadd.s32 %s141, 1
      %p145 = scmp.eq.s32.totalorder %s15, 3
      %p146 = scmp.ne.s32.totalorder %s141, %s143
      %p147 = scmp.eq.s32.totalorder %s15, 0
      %p148 = por %p146, %p147
      %p149 = scmp.ne.s32.totalorder %s141, %s143
      %p150 = scmp.eq.s32.totalorder %s20, 3
      %p151 = por %p149, %p150
      %p152 = scmp.ne.s32.totalorder %s143, %s144
      %p153 = scmp.eq.s32.totalorder %s20, 0
      %p154 = por %p152, %p153
      %p155 = scmp.ne.s32.totalorder %s143, %s144
      %p156 = scmp.eq.s32.totalorder %s21, 3
      %p157 = por %p155, %p156
      %p159 = scmp.ne.s32.totalorder %s144, %s158
      %p160 = scmp.eq.s32.totalorder %s21, 0
      %p161 = por %p159, %p160
      %s163 = sadd.s32 %s162, 1
      %p166 = scmp.eq.s32.totalorder %s15, 3
      %p167 = scmp.ne.s32.totalorder %s162, %s164
      %p168 = scmp.eq.s32.totalorder %s15, 0
      %p169 = por %p167, %p168
      %p170 = scmp.ne.s32.totalorder %s162, %s164
      %p171 = scmp.eq.s32.totalorder %s20, 3
      %p172 = por %p170, %p171
      %p173 = scmp.ne.s32.totalorder %s164, %s165
      %p174 = scmp.eq.s32.totalorder %s20, 0
      %p175 = por %p173, %p174
      %p176 = scmp.ne.s32.totalorder %s164, %s165
      %p177 = scmp.eq.s32.totalorder %s21, 3
      %p178 = por %p176, %p177
      %p180 = scmp.ne.s32.totalorder %s165, %s179
      %p181 = scmp.eq.s32.totalorder %s21, 0
      %p182 = por %p180, %p181
      %s184 = sadd.s32 %s183, 1
      %p187 = scmp.eq.s32.totalorder %s15, 3
      %p188 = scmp.ne.s32.totalorder %s183, %s185
      %p189 = scmp.eq.s32.totalorder %s15, 0
      %p190 = por %p188, %p189
      %p191 = scmp.ne.s32.totalorder %s183, %s185
      %p192 = scmp.eq.s32.totalorder %s20, 3
      %p193 = por %p191, %p192
      %p194 = scmp.ne.s32.totalorder %s185, %s186
      %p195 = scmp.eq.s32.totalorder %s20, 0
      %p196 = por %p194, %p195
      %p197 = scmp.ne.s32.totalorder %s185, %s186
      %p198 = scmp.eq.s32.totalorder %s21, 3
      %p199 = por %p197, %p198
      %p201 = scmp.ne.s32.totalorder %s186, %s200
      %p202 = scmp.eq.s32.totalorder %s21, 0
      %p203 = por %p201, %p202
      %p204 = scmp.le.s32.totalorder 1, %s15
      %p205 = scmp.lt.s32.totalorder %s15, 5
      %p206 = pnand %p204, %p205
      %p207 = pneg %p206
      // Predicated region
      $region9: #{tpu_custom_call.1} parent=5 // pred_check
        _
      $region10: #{tpu_custom_call.1} parent=5 // pred_check_branch
        %209 = sbr.rel (%p206) target = $region12
      $region11: #{tpu_custom_call.1} parent=5 // pred_region
        %s210 = ssub.s32 %s15, 1
        // Predicated region
        $region13: #{tpu_custom_call.1} parent=11 // pred_check
          %p211 = pneg %p62
        $region14: #{tpu_custom_call.1} parent=11 // pred_check_branch
          %213 = sbr.rel (%p211) target = $region16
        $region15: #{tpu_custom_call.1} parent=11 // pred_region
          _
        $region16: #{tpu_custom_call.1} parent=11 // pred_fallthru
          _
        // Predicated region
        $region17: #{tpu_custom_call.1} parent=11 // pred_check
          %p214 = pneg %p133
        $region18: #{tpu_custom_call.1} parent=11 // pred_check_branch
          %216 = sbr.rel (%p214) target = $region20
        $region19: #{tpu_custom_call.1} parent=11 // pred_region
          _
        $region20: #{tpu_custom_call.1} parent=11 // pred_fallthru
          _
        // Predicated region
        $region21: #{tpu_custom_call.1} parent=11 // pred_check
          %p217 = pneg %p154
        $region22: #{tpu_custom_call.1} parent=11 // pred_check_branch
          %219 = sbr.rel (%p217) target = $region24
        $region23: #{tpu_custom_call.1} parent=11 // pred_region
          _
        $region24: #{tpu_custom_call.1} parent=11 // pred_fallthru
          _
      $region12: #{tpu_custom_call.1} parent=5 // pred_fallthru
        _
      %p220 = scmp.lt.s32.totalorder %s15, 4
      // Predicated region
      $region25: #{tpu_custom_call.1} parent=5 // pred_check
        %p221 = pneg %p220
      $region26: #{tpu_custom_call.1} parent=5 // pred_check_branch
        %223 = sbr.rel (%p221) target = $region28
      $region27: #{tpu_custom_call.1} parent=5 // pred_region
        // Predicated region
        $region29: #{tpu_custom_call.1} parent=27 // pred_check
          %p224 = pneg %p35
        $region30: #{tpu_custom_call.1} parent=27 // pred_check_branch
          %226 = sbr.rel (%p224) target = $region32
        $region31: #{tpu_custom_call.1} parent=27 // pred_region
          %s227 = smul.u32 4, %s15
          %p228 = scmp.lt.s32.totalorder %s227, 15
          %s229 = scalar_select %p228, %s227, 15
          %s230 = smul.addr %s229, 8
          %s231 = scalar_lea.vmem %s0, %s230
          %s232 = smul.u32 4, %s15
        $region32: #{tpu_custom_call.1} parent=27 // pred_fallthru
          _
        // Predicated region
        $region33: #{tpu_custom_call.1} parent=27 // pred_check
          %p233 = pneg %p106
        $region34: #{tpu_custom_call.1} parent=27 // pred_check_branch
          %235 = sbr.rel (%p233) target = $region36
        $region35: #{tpu_custom_call.1} parent=27 // pred_region
          %p236 = scmp.lt.s32.totalorder %s15, 0
          %s237 = ssub.s32 0, %s15
          %s238 = scalar_select %p236, %s237, %s15
          %s239 = sand.u32 %s238, 1
          %s240 = ssub.s32 0, %s239
          %s241 = scalar_select %p236, %s240, %s239
          %p242 = scmp.ne.s32.totalorder %s241, 0
          %p243 = scmp.lt.s32.totalorder %s241, 0
          %p244 = pnand %p243, %p242
          %p245 = pneg %p244
          %s246 = sadd.s32 %s241, 2
          %s247 = scalar_select %p245, %s246, %s241
          %s248 = smul.u32 4, %s247
          %p249 = scmp.lt.s32.totalorder %s248, 7
          %s250 = scalar_select %p249, %s248, 7
          %s251 = smul.addr %s250, 8
          %s252 = scalar_lea.vmem %s2, %s251
          %p253 = scmp.lt.s32.totalorder %s15, 0
          %s254 = ssub.s32 0, %s15
          %s255 = scalar_select %p253, %s254, %s15
          %s256 = sand.u32 %s255, 1
          %s257 = ssub.s32 0, %s256
          %s258 = scalar_select %p253, %s257, %s256
          %p259 = scmp.ne.s32.totalorder %s258, 0
          %p260 = scmp.lt.s32.totalorder %s258, 0
          %p261 = pnand %p260, %p259
          %p262 = pneg %p261
          %s263 = sadd.s32 %s258, 2
          %s264 = scalar_select %p262, %s263, %s258
          %s265 = smul.u32 4, %s264
        $region36: #{tpu_custom_call.1} parent=27 // pred_fallthru
          _
      $region28: #{tpu_custom_call.1} parent=5 // pred_fallthru
        _
      %p266 = scmp.le.s32.totalorder 1, %s15
      %p267 = scmp.lt.s32.totalorder %s15, 5
      %p268 = pnand %p266, %p267
      %p269 = pneg %p268
      // Predicated region
      $region37: #{tpu_custom_call.1} parent=5 // pred_check
        _
      $region38: #{tpu_custom_call.1} parent=5 // pred_check_branch
        %271 = sbr.rel (%p268) target = $region40
      $region39: #{tpu_custom_call.1} parent=5 // pred_region
        %s272 = ssub.s32 %s15, 1
        %s273 = smul.u32 4, %s20
        %p274 = scmp.lt.s32.totalorder %s273, 15
        %s275 = scalar_select %p274, %s273, 15
        %s276 = smul.addr %s275, 8
        %s277 = scalar_lea.vmem %s0, %s276
        %p278 = pneg %p41
        %p279 = pneg %p38
        %p280 = pneg %p62
        %p281 = pneg %p59
        %p282 = scmp.lt.s32.totalorder %s20, 0
        %s283 = ssub.s32 0, %s20
        %s284 = scalar_select %p282, %s283, %s20
        %s285 = sand.u32 %s284, 1
        %s286 = ssub.s32 0, %s285
        %s287 = scalar_select %p282, %s286, %s285
        %p288 = scmp.ne.s32.totalorder %s287, 0
        %p289 = scmp.lt.s32.totalorder %s287, 0
        %p290 = pnand %p289, %p288
        %p291 = pneg %p290
        %s292 = sadd.s32 %s287, 2
        %s293 = scalar_select %p291, %s292, %s287
        %s294 = smul.u32 4, %s293
        %p295 = scmp.lt.s32.totalorder %s294, 7
        %s296 = scalar_select %p295, %s294, 7
        %s297 = smul.addr %s296, 8
        %s298 = scalar_lea.vmem %s2, %s297
        %p299 = pneg %p112
        %p300 = pneg %p109
        %p301 = pneg %p133
        %p302 = pneg %p130
        %p303 = pneg %p154
        %p304 = pneg %p151
        %p305 = pneg %p175
        %p306 = pneg %p172
        %p307 = pneg %p196
        %p308 = pneg %p193
        %s309 = smul.u32 4, %s20
        %p310 = scmp.lt.s32.totalorder %s309, 15
        %s311 = scalar_select %p310, %s309, 15
        %s312 = smul.addr %s311, 8
        %s313 = scalar_lea.vmem %s0, %s312
        %s314 = smul.u32 4, %s20
        %p315 = scmp.lt.s32.totalorder %s20, 0
        %s316 = ssub.s32 0, %s20
        %s317 = scalar_select %p315, %s316, %s20
        %s318 = sand.u32 %s317, 1
        %s319 = ssub.s32 0, %s318
        %s320 = scalar_select %p315, %s319, %s318
        %p321 = scmp.ne.s32.totalorder %s320, 0
        %p322 = scmp.lt.s32.totalorder %s320, 0
        %p323 = pnand %p322, %p321
        %p324 = pneg %p323
        %s325 = sadd.s32 %s320, 2
        %s326 = scalar_select %p324, %s325, %s320
        %s327 = smul.u32 4, %s326
        %p328 = scmp.lt.s32.totalorder %s327, 7
        %s329 = scalar_select %p328, %s327, 7
        %s330 = smul.addr %s329, 8
        %s331 = scalar_lea.vmem %s2, %s330
        %p332 = scmp.lt.s32.totalorder %s20, 0
        %s333 = ssub.s32 0, %s20
        %s334 = scalar_select %p332, %s333, %s20
        %s335 = sand.u32 %s334, 1
        %s336 = ssub.s32 0, %s335
        %s337 = scalar_select %p332, %s336, %s335
        %p338 = scmp.ne.s32.totalorder %s337, 0
        %p339 = scmp.lt.s32.totalorder %s337, 0
        %p340 = pnand %p339, %p338
        %p341 = pneg %p340
        %s342 = sadd.s32 %s337, 2
        %s343 = scalar_select %p341, %s342, %s337
        %s344 = smul.u32 4, %s343
        %p345 = scmp.eq.s32.totalorder %s20, 0
        // Predicated region
        $region41: #{tpu_custom_call.1} parent=39 // pred_check
          %p346 = pneg %p345
        $region42: #{tpu_custom_call.1} parent=39 // pred_check_branch
          %348 = sbr.rel (%p346) target = $region44
        $region43: #{tpu_custom_call.1} parent=39 // pred_region
          %349 = vst [vmem:[#allocation2] sm:$0x1] 0.0
          %350 = vst [vmem:[#allocation3] sm:$0x1] 0.0
        $region44: #{tpu_custom_call.1} parent=39 // pred_fallthru
          _
        %v351 = vld [vmem:[%s313] sm:$0xff]
        %v352 = vld [vmem:[%s313 + $0x8] sm:$0xff]
        %v353 = vld [vmem:[%s313 + $0x10] sm:$0xff]
        %v354 = vld [vmem:[%s313 + $0x18] sm:$0xff]
        %v355 = vld [vmem:[%s1] sm:$0xff]
        %v356 = vld [vmem:[%s1 + $0x8] sm:$0xff]
        %v357 = vld [vmem:[%s1 + $0x10] sm:$0xff]
        %v358 = vld [vmem:[%s1 + $0x18] sm:$0xff]
        %v359 = vld [vmem:[%s1 + $0x20] sm:$0xff]
        %v360 = vld [vmem:[%s1 + $0x28] sm:$0xff]
        %v361 = vld [vmem:[%s1 + $0x30] sm:$0xff]
        %v362 = vld [vmem:[%s1 + $0x38] sm:$0xff]
        %v363 = vld [vmem:[%s331] sm:$0xff]
        %v364 = vld [vmem:[%s331 + $0x8] sm:$0xff]
        %v365 = vld [vmem:[%s331 + $0x10] sm:$0xff]
        %v366 = vld [vmem:[%s331 + $0x18] sm:$0xff]
        %vm367 = vcmask 523264
        %v369 = vsel %vm367, %v351, 0
        %v372 = vsel %vm367, %v352, 0
        %v375 = vsel %vm367, %v353, 0
        %v378 = vsel %vm367, %v354, 0
        %380 = vmatprep.subr.mxu0 0.0
        %381 = vmatpush1.msra.mxu0 %v355
        %382 = vmatprep.subr.mxu0 0.0
        %383 = vmatpush1.msra.mxu0 %v356
        %384 = vmatprep.subr.mxu0 0.0
        %385 = vmatpush1.msra.mxu0 %v357
        %386 = vmatprep.subr.mxu0 0.0
        %387 = vmatpush1.msra.mxu0 %v358
        %388 = vmatprep.subr.mxu0 0.0
        %389 = vmatpush1.msra.mxu0 %v359
        %390 = vmatprep.subr.mxu0 0.0
        %391 = vmatpush1.msra.mxu0 %v360
        %392 = vmatprep.subr.mxu0 0.0
        %393 = vmatpush1.msra.mxu0 %v361
        %394 = vmatprep.subr.mxu0 0.0
        %395 = vmatpush1.msra.mxu0 %v362
        %396 = vmatprep.subr.mxu0 0.0
        %397 = vmatpush1.msra.mxu0 0.0
        %398 = vmatprep.subr.mxu0 0.0
        %399 = vmatpush1.msra.mxu0 0.0
        %400 = vmatprep.subr.mxu0 0.0
        %401 = vmatpush1.msra.mxu0 0.0
        %402 = vmatprep.subr.mxu0 0.0
        %403 = vmatpush1.msra.mxu0 0.0
        %404 = vmatprep.subr.mxu0 0.0
        %405 = vmatpush1.msra.mxu0 0.0
        %406 = vmatprep.subr.mxu0 0.0
        %407 = vmatpush1.msra.mxu0 0.0
        %408 = vmatprep.subr.mxu0 0.0
        %409 = vmatpush1.msra.mxu0 0.0
        %410 = vmatprep.subr.mxu0 0.0
        %411 = vmatpush1.msra.mxu0 0.0
        %412 = vmatprep.subr.mxu0 0.0
        %413 = vmatpush1.msra.mxu0 0.0
        %414 = vmatprep.subr.mxu0 0.0
        %415 = vmatpush1.msra.mxu0 0.0
        %416 = vmatprep.subr.mxu0 0.0
        %417 = vmatpush1.msra.mxu0 0.0
        %418 = vmatprep.subr.mxu0 0.0
        %419 = vmatpush1.msra.mxu0 0.0
        %420 = vmatprep.subr.mxu0 0.0
        %421 = vmatpush1.msra.mxu0 0.0
        %422 = vmatprep.subr.mxu0 0.0
        %423 = vmatpush1.msra.mxu0 0.0
        %424 = vmatprep.subr.mxu0 0.0
        %425 = vmatpush1.msra.mxu0 0.0
        %426 = vmatprep.subr.mxu0 0.0
        %427 = vmatpush1.msra.mxu0 0.0
        %428 = vmatprep.subr.mxu0 0.0
        %429 = vmatpush1.msra.mxu0 0.0
        %430 = vmatprep.subr.mxu0 0.0
        %431 = vmatpush1.msra.mxu0 0.0
        %432 = vmatprep.subr.mxu0 0.0
        %433 = vmatpush1.msra.mxu0 0.0
        %434 = vmatprep.subr.mxu0 0.0
        %435 = vmatpush1.msra.mxu0 0.0
        %436 = vmatprep.subr.mxu0 0.0
        %437 = vmatpush1.msra.mxu0 0.0
        %438 = vmatprep.subr.mxu0 0.0
        %439 = vmatpush1.msra.mxu0 0.0
        %440 = vmatprep.subr.mxu0 0.0
        %441 = vmatpush1.msra.mxu0 0.0
        %442 = vmatprep.subr.mxu0 0.0
        %443 = vmatpush1.msra.mxu0 0.0
        %444 = vmatprep.mubr.f32.mxu0 0.0
        %445 = vmatmul.mubr.f32.gmra.mrb[0].mxu0 %v369
        %v446 = vpop.f32.mrb[0].mxu0
        %v447 = vadd.f32 %v363, %v446
        %v448 = vpop.f32.mrb[0].mxu0
        %449 = vmatprep.mubr.f32.mxu0 0.0
        %450 = vmatmul.mubr.f32.gmra.mrb[0].mxu0 %v372
        %v451 = vpop.f32.mrb[0].mxu0
        %v452 = vadd.f32 %v364, %v451
        %v453 = vpop.f32.mrb[0].mxu0
        %454 = vmatprep.mubr.f32.mxu0 0.0
        %455 = vmatmul.mubr.f32.gmra.mrb[0].mxu0 %v375
        %v456 = vpop.f32.mrb[0].mxu0
        %v457 = vadd.f32 %v365, %v456
        %v458 = vpop.f32.mrb[0].mxu0
        %459 = vmatprep.mubr.f32.mxu0 0.0
        %460 = vmatmul.mubr.f32.gmra.mrb[0].mxu0 %v378
        %v461 = vpop.f32.mrb[0].mxu0
        %v462 = vadd.f32 %v366, %v461
        %v463 = vpop.f32.mrb[0].mxu0
        %464 = vdwg.mxu0
        %v465 = vld [vmem:[#allocation2] sm:$0x1]
        %v466 = vadd.f32 %v447, %v452
        %v467 = vadd.f32 %v466, %v457
        %v468 = vadd.f32 %v467, %v462
        %v469 = vrot.slane %v468, 4
        %v470 = vadd.f32 %v468, %v469
        %v471 = vrot.slane %v470, 2
        %v472 = vadd.f32 %v470, %v471
        %v473 = vrot.slane %v472, 1
        %v474 = vadd.f32 %v472, %v473
        %v475 = vadd.f32 %v465, %v474
        %476 = vst [vmem:[#allocation2] sm:$0x1] %v475
        %v477 = vld [vmem:[#allocation3] sm:$0x1]
        %v478 = vmul.f32 %v447, %v447
        %v479 = vmul.f32 %v452, %v452
        %v480 = vmul.f32 %v457, %v457
        %v481 = vmul.f32 %v462, %v462
        %v482 = vadd.f32 %v478, %v479
        %v483 = vadd.f32 %v482, %v480
        %v484 = vadd.f32 %v483, %v481
        %v485 = vrot.slane %v484, 4
        %v486 = vadd.f32 %v484, %v485
        %v487 = vrot.slane %v486, 2
        %v488 = vadd.f32 %v486, %v487
        %v489 = vrot.slane %v488, 1
        %v490 = vadd.f32 %v488, %v489
        %v491 = vadd.f32 %v477, %v490
        %492 = vst [vmem:[#allocation3] sm:$0x1] %v491
        %p493 = scmp.eq.s32.totalorder %s20, 3
        // Predicated region
        $region45: #{tpu_custom_call.1} parent=39 // pred_check
          %p494 = pneg %p493
        $region46: #{tpu_custom_call.1} parent=39 // pred_check_branch
          %496 = sbr.rel (%p494) target = $region48
        $region47: #{tpu_custom_call.1} parent=39 // pred_region
          %v497 = vld [vmem:[#allocation2] sm:$0x1]
          %v498 = vmul.f32 %v497, 0.0078125
          %v499 = vld [vmem:[#allocation3] sm:$0x1]
          %v500 = vmul.f32 %v499, 0.0078125
          %v501 = vmul.f32 %v498, %v498
          %v502 = vsub.f32 %v500, %v501
          %v503 = vmax.f32 %v502, 0.0
          %v504 = vld [vmem:[%s3] sm:$0x1]
          %v505 = vadd.f32 %v503, 1e-05
          %v506 = vrsqrt.pop %v505
          %v507 = vmul.f32 %v504, %v506
          %508 = vst [vmem:[#allocation4] sm:$0x1] %v507
          %v509 = vld [vmem:[%s4] sm:$0x1]
          %v510 = vmul.f32 %v498, %v507
          %v511 = vsub.f32 %v509, %v510
          %512 = vst [vmem:[#allocation6] sm:$0x1] %v511
        $region48: #{tpu_custom_call.1} parent=39 // pred_fallthru
          _
        // Predicated region
        $region49: #{tpu_custom_call.1} parent=39 // pred_check
          %p513 = pneg %p172
        $region50: #{tpu_custom_call.1} parent=39 // pred_check_branch
          %515 = sbr.rel (%p513) target = $region52
        $region51: #{tpu_custom_call.1} parent=39 // pred_region
          %s517 = ssub.s32 16, 16
          %518 = vsyncadd [#allocation5], %s517
          %s520 = sshll.u32 [#allocation4], 4
          %s521 = int_to_ptr.vmem [resolvable:$true] %s520
          %523 = dma.vmem_to_hbm [thread:$0]  %s521, 16, %s5, [#allocation5]
        $region52: #{tpu_custom_call.1} parent=39 // pred_fallthru
          _
        // Predicated region
        $region53: #{tpu_custom_call.1} parent=39 // pred_check
          %p524 = pneg %p193
        $region54: #{tpu_custom_call.1} parent=39 // pred_check_branch
          %526 = sbr.rel (%p524) target = $region56
        $region55: #{tpu_custom_call.1} parent=39 // pred_region
          %s528 = ssub.s32 16, 16
          %529 = vsyncadd [#allocation7], %s528
          %s531 = sshll.u32 [#allocation6], 4
          %s532 = int_to_ptr.vmem [resolvable:$true] %s531
          %534 = dma.vmem_to_hbm [thread:$0]  %s532, 16, %s6, [#allocation7]
        $region56: #{tpu_custom_call.1} parent=39 // pred_fallthru
          _
        // Predicated region
        $region57: #{tpu_custom_call.1} parent=39 // pred_check
          %p535 = pneg %p172
        $region58: #{tpu_custom_call.1} parent=39 // pred_check_branch
          %537 = sbr.rel (%p535) target = $region60
        $region59: #{tpu_custom_call.1} parent=39 // pred_region
          %538 = dma.done [#allocation5], 16
        $region60: #{tpu_custom_call.1} parent=39 // pred_fallthru
          _
        // Predicated region
        $region61: #{tpu_custom_call.1} parent=39 // pred_check
          %p539 = pneg %p193
        $region62: #{tpu_custom_call.1} parent=39 // pred_check_branch
          %541 = sbr.rel (%p539) target = $region64
        $region63: #{tpu_custom_call.1} parent=39 // pred_region
          %542 = dma.done [#allocation7], 16
        $region64: #{tpu_custom_call.1} parent=39 // pred_fallthru
          _
      $region40: #{tpu_custom_call.1} parent=5 // pred_fallthru
        _
      %p543 = scmp.le.s32.totalorder 2, %s15
      // Predicated region
      $region65: #{tpu_custom_call.1} parent=5 // pred_check
        %p544 = pneg %p543
      $region66: #{tpu_custom_call.1} parent=5 // pred_check_branch
        %546 = sbr.rel (%p544) target = $region68
      $region67: #{tpu_custom_call.1} parent=5 // pred_region
        %s547 = ssub.s32 %s15, 2
      $region68: #{tpu_custom_call.1} parent=5 // pred_fallthru
        _
    $region6: #{tpu_custom_call.1} parent=1 // loop_footer
      %s19 = sadd.s32 1, %s15
    $region7: #{tpu_custom_call.1} parent=1 // loop_footer_branch
      %14 = sbr.rel target = $region3
    $region8: #{tpu_custom_call.1} parent=1 // loop_exit
      _
    %548 = vsyncpa [#allocation5], 1
    %s549 = scalar_lea.sflag [#allocation5], 1
    %550 = vsyncpa %s549, 1
    %551 = vsyncpa [#allocation7], 1

</llo_original>
